<compile_context>
chip_gen: v5e
topology: v5e:2x2
jax: 0.10.0
libtpu: 0.0.40
codegen_flags: <defaults>
</compile_context>

<pallas_src>
import jax
import jax.numpy as jnp
from jax.experimental import pallas as pl
from jax.experimental.pallas import tpu as pltpu


def _round_up(x, m):
    return ((x + m - 1) // m) * m


def _device_kind() -> str:
    try:
        return jax.devices()[0].device_kind.lower()
    except Exception:
        return ""


def _bf16_hidden() -> bool:
    # bf16 VALU exists on v6e / v7x; v5e and older should keep f32 elementwise.
    kind = _device_kind()
    return any(t in kind for t in ("v6", "v7", "7x"))


def _two_tensorcores() -> bool:
    kind = _device_kind()
    return ("v7" in kind) or ("7x" in kind)


def actor_kernel(s_ref, w1_ref, b1_ref, w2_ref, b2_ref, w3_ref, b3_ref, o_ref):
    """One batch tile: 3 Linear layers (MXU, bf16 operands) + ReLU + softmax.

    Hidden-layer elementwise precision is selected by the dtype of b1/b2:
      * bf16 biases -> bias-add/ReLU in bf16 (v6e/v7x bf16 VALU path)
      * f32  biases -> bias-add/ReLU in f32  (v5e: no bf16 VALU)
    The output layer always accumulates and softmaxes in f32.
    """
    bf16 = jnp.bfloat16
    # No-op if the caller already feeds bf16 state (recommended for large batches).
    x = s_ref[...].astype(bf16)

    # fc1 + ReLU
    h1 = jnp.dot(x, w1_ref[...], preferred_element_type=b1_ref.dtype) + b1_ref[...]
    h1 = jnp.maximum(h1, 0).astype(bf16)

    # fc2 + ReLU
    h2 = jnp.dot(h1, w2_ref[...], preferred_element_type=b2_ref.dtype) + b2_ref[...]
    h2 = jnp.maximum(h2, 0).astype(bf16)

    # out + softmax(dim=-1), f32, max-subtracted; denominator via EUP approx reciprocal.
    # Padded rows of a remainder tile are handled row-independently (max-subtraction
    # caps exp at 1) and are masked on writeback.
    logits = jnp.dot(h2, w3_ref[...], preferred_element_type=jnp.float32) + b3_ref[...]
    m = jnp.max(logits, axis=-1, keepdims=True)
    e = jnp.exp(logits - m)
    inv = pl.reciprocal(jnp.sum(e, axis=-1, keepdims=True), approx=True)
    probs = e * inv

    # If the output block is the lane-dense repack (tb*ad/128, 128), reshape into it
    # (pure row-major reinterpretation); otherwise this reshape is a no-op.
    o_ref[...] = probs.reshape(o_ref.shape).astype(o_ref.dtype)


def actor_forward(state, w1, b1, w2, b2, w3, b3, *, block_b=4096, lane_dense_out=True):
    """state: [B, state_dim] (f32 or bf16). Weights [in, out], biases [1, out]."""
    B, state_dim = state.shape
    action_dim = w3.shape[1]
    bf16 = jnp.bfloat16

    # One-time parameter casts OUTSIDE the kernel (kernel must not re-cast per step).
    w1c, w2c, w3c = w1.astype(bf16), w2.astype(bf16), w3.astype(bf16)
    hdt = bf16 if _bf16_hidden() else jnp.float32
    b1c, b2c = b1.astype(hdt), b2.astype(hdt)
    b3c = b3.astype(jnp.float32)

    # Batch tile selection: large, (nearly) even split; >=2 grid steps on v7x so the
    # "parallel" batch axis actually uses both TensorCores. Multiples of 16 so the
    # lane-dense output packing stays legal.
    min_steps = 2 if (_two_tensorcores() and B >= 32) else 1
    if min_steps == 1 and B <= block_b:
        tb = B
    else:
        n_steps = max(min_steps, pl.cdiv(B, block_b))
        tb = _round_up(pl.cdiv(B, n_steps), 16)
    grid = (pl.cdiv(B, tb),)

    def resident(arr):
        nd = arr.ndim
        return pl.BlockSpec(arr.shape, lambda i, _nd=nd: (0,) * _nd)

    in_specs = [
        pl.BlockSpec((tb, state_dim), lambda i: (i, 0)),  # state: tiled (double-buffered)
        resident(w1c), resident(b1c),                     # weights/biases: VMEM-resident
        resident(w2c), resident(b2c),
        resident(w3c), resident(b3c),
    ]
    args = (state, w1c, b1c, w2c, b2c, w3c, b3c)
    cparams = pltpu.CompilerParams(
        dimension_semantics=("parallel",),       # megacore sharding on v7x
        vmem_limit_bytes=32 * 1024 * 1024,
    )

    def run(packed):
        if packed:
            rows = (tb * action_dim) // 128
            out_shape = jax.ShapeDtypeStruct((B * action_dim // 128, 128), jnp.float32)
            out_spec = pl.BlockSpec((rows, 128), lambda i: (i, 0))
        else:
            out_shape = jax.ShapeDtypeStruct((B, action_dim), jnp.float32)
            out_spec = pl.BlockSpec((tb, action_dim), lambda i: (i, 0))
        return pl.pallas_call(
            actor_kernel,
            out_shape=out_shape,
            grid=grid,
            in_specs=in_specs,
            out_specs=out_spec,
            compiler_params=cparams,
        )(*args)

    can_pack = (
        lane_dense_out
        and action_dim <= 128
        and 128 % action_dim == 0
        and (tb * action_dim) % 128 == 0
        and (B * action_dim) % 128 == 0
    )
    if can_pack:
        try:
            # Lane-dense store: (B*ad/128, 128) slab, reinterpreted back row-major.
            return run(packed=True).reshape(B, action_dim)
        except Exception:
            # The in-kernel (tb, ad) -> (tb*ad/128, 128) repack may not lower on every
            # Mosaic toolchain; fall back to the plain (masked-store) output layout.
            pass
    return run(packed=False)


def init_params(key, state_dim, action_dim, hidden=64):
    """PyTorch-style uniform init, weights stored as [in, out]."""
    ks = jax.random.split(key, 6)

    def linear(kw, kb, fan_in, fan_out):
        bound = 1.0 / jnp.sqrt(fan_in)
        w = jax.random.uniform(kw, (fan_in, fan_out), jnp.float32, -bound, bound)
        b = jax.random.uniform(kb, (1, fan_out), jnp.float32, -bound, bound)
        return w, b

    w1, b1 = linear(ks[0], ks[1], state_dim, hidden)
    w2, b2 = linear(ks[2], ks[3], hidden, hidden)
    w3, b3 = linear(ks[4], ks[5], hidden, action_dim)
    return w1, b1, w2, b2, w3, b3


def actor_ref_mixed(state, w1, b1, w2, b2, w3, b3, *, bf16_hidden):
    """Reference with the same bf16-operand / mixed-precision numerics as the kernel."""
    bf16 = jnp.bfloat16
    hdt = bf16 if bf16_hidden else jnp.float32
    x = state.astype(bf16)
    h1 = jnp.maximum(jnp.dot(x, w1.astype(bf16), preferred_element_type=hdt)
                     + b1.astype(hdt), 0).astype(bf16)
    h2 = jnp.maximum(jnp.dot(h1, w2.astype(bf16), preferred_element_type=hdt)
                     + b2.astype(hdt), 0).astype(bf16)
    logits = jnp.dot(h2, w3.astype(bf16), preferred_element_type=jnp.float32) + b3
    return jax.nn.softmax(logits, axis=-1)


def actor_ref_f32(state, w1, b1, w2, b2, w3, b3):
    """Pure f32 reference (PyTorch semantics)."""
    h1 = jax.nn.relu(state @ w1 + b1)
    h2 = jax.nn.relu(h1 @ w2 + b2)
    return jax.nn.softmax(h2 @ w3 + b3, axis=-1)


if __name__ == "__main__":
    key = jax.random.PRNGKey(0)
    k_params, k_small, k_big = jax.random.split(key, 3)

    state_dim, action_dim = 16, 8
    params = init_params(k_params, state_dim, action_dim)
    bf16_hidden = _bf16_hidden()

    # Small case (matches the module's toy usage): single block, plain output path.
    batch = 2
    state = jax.random.normal(k_small, (batch, state_dim), jnp.float32)
    out = jax.block_until_ready(actor_forward(state, *params))
    assert out.shape == (batch, action_dim)
    assert jnp.allclose(out, actor_ref_mixed(state, *params, bf16_hidden=bf16_hidden),
                        atol=1e-2, rtol=1e-2)
    assert jnp.allclose(out, actor_ref_f32(state, *params), atol=3e-2, rtol=3e-2)
    assert jnp.allclose(jnp.sum(out, axis=-1), jnp.ones((batch,)), atol=1e-2)

    # Larger batch with a small block_b to force a multi-step grid (incl. a remainder
    # tile) and, where supported, the lane-dense packed output store.
    big_batch = 640
    state_big = jax.random.normal(k_big, (big_batch, state_dim), jnp.float32)
    out_big = jax.block_until_ready(actor_forward(state_big, *params, block_b=256))
    assert out_big.shape == (big_batch, action_dim)
    assert jnp.allclose(out_big,
                        actor_ref_mixed(state_big, *params, bf16_hidden=bf16_hidden),
                        atol=1e-2, rtol=1e-2)
    assert jnp.allclose(out_big, actor_ref_f32(state_big, *params), atol=3e-2, rtol=3e-2)
    assert jnp.allclose(jnp.sum(out_big, axis=-1), jnp.ones((big_batch,)), atol=1e-2)

    print("KERNEL_OK")
</pallas_src>

<mosaic_0001>
module attributes {stable_mosaic.version = 11 : i64} {
  func.func @actor_kernel(%arg0: i32, %arg1: memref<2x16xf32, #tpu.memory_space<vmem>>, %arg2: memref<16x64xbf16, #tpu.memory_space<vmem>>, %arg3: memref<1x64xf32, #tpu.memory_space<vmem>>, %arg4: memref<64x64xbf16, #tpu.memory_space<vmem>>, %arg5: memref<1x64xf32, #tpu.memory_space<vmem>>, %arg6: memref<64x8xbf16, #tpu.memory_space<vmem>>, %arg7: memref<1x8xf32, #tpu.memory_space<vmem>>, %arg8: memref<2x8xf32, #tpu.memory_space<vmem>>) attributes {dimension_semantics = [#tpu.dimension_semantics<parallel>], iteration_bounds = array<i64: 1>, scalar_prefetch = 0 : i64, scratch_operands = 0 : i64, tpu.core_type = #tpu.core_type<tc>, window_params = [{transform_indices = @transform_0, window_bounds = array<i64: 2, 16>}, {pipeline_mode = #tpu.pipeline_mode<synchronous>, transform_indices = @transform_1, window_bounds = array<i64: 16, 64>}, {pipeline_mode = #tpu.pipeline_mode<synchronous>, transform_indices = @transform_2, window_bounds = array<i64: 1, 64>}, {pipeline_mode = #tpu.pipeline_mode<synchronous>, transform_indices = @transform_3, window_bounds = array<i64: 64, 64>}, {pipeline_mode = #tpu.pipeline_mode<synchronous>, transform_indices = @transform_4, window_bounds = array<i64: 1, 64>}, {pipeline_mode = #tpu.pipeline_mode<synchronous>, transform_indices = @transform_5, window_bounds = array<i64: 64, 8>}, {pipeline_mode = #tpu.pipeline_mode<synchronous>, transform_indices = @transform_6, window_bounds = array<i64: 1, 8>}, {transform_indices = @transform_7, window_bounds = array<i64: 2, 8>}]} {
    %c0 = arith.constant 0 : index
    %c0_0 = arith.constant 0 : index
    %0 = vector.load %arg1[%c0, %c0_0] : memref<2x16xf32, #tpu.memory_space<vmem>>, vector<2x16xf32>
    %1 = arith.truncf %0 : vector<2x16xf32> to vector<2x16xbf16>
    %c0_1 = arith.constant 0 : index
    %c0_2 = arith.constant 0 : index
    %2 = vector.load %arg2[%c0_1, %c0_2] : memref<16x64xbf16, #tpu.memory_space<vmem>>, vector<16x64xbf16>
    %cst = arith.constant dense<0.000000e+00> : vector<2x64xf32>
    %3 = tpu.matmul %1, %2, %cst {dimension_numbers = #tpu.dot_dimension_numbers<[1], [0], [0], [1], [0, 0, 1, 1], [], []>} : vector<2x16xbf16>, vector<16x64xbf16>, vector<2x64xf32> -> vector<2x64xf32>
    %c0_3 = arith.constant 0 : index
    %c0_4 = arith.constant 0 : index
    %4 = vector.load %arg3[%c0_3, %c0_4] : memref<1x64xf32, #tpu.memory_space<vmem>>, vector<1x64xf32>
    %5 = vector.broadcast %4 : vector<1x64xf32> to vector<2x64xf32>
    %6 = arith.addf %3, %5 : vector<2x64xf32>
    %cst_5 = arith.constant 0.000000e+00 : f32
    %7 = vector.broadcast %cst_5 : f32 to vector<2x64xf32>
    %8 = arith.maximumf %6, %7 : vector<2x64xf32>
    %9 = arith.truncf %8 : vector<2x64xf32> to vector<2x64xbf16>
    %c0_6 = arith.constant 0 : index
    %c0_7 = arith.constant 0 : index
    %10 = vector.load %arg4[%c0_6, %c0_7] : memref<64x64xbf16, #tpu.memory_space<vmem>>, vector<64x64xbf16>
    %cst_8 = arith.constant dense<0.000000e+00> : vector<2x64xf32>
    %11 = tpu.matmul %9, %10, %cst_8 {dimension_numbers = #tpu.dot_dimension_numbers<[1], [0], [0], [1], [0, 0, 1, 1], [], []>} : vector<2x64xbf16>, vector<64x64xbf16>, vector<2x64xf32> -> vector<2x64xf32>
    %c0_9 = arith.constant 0 : index
    %c0_10 = arith.constant 0 : index
    %12 = vector.load %arg5[%c0_9, %c0_10] : memref<1x64xf32, #tpu.memory_space<vmem>>, vector<1x64xf32>
    %13 = vector.broadcast %12 : vector<1x64xf32> to vector<2x64xf32>
    %14 = arith.addf %11, %13 : vector<2x64xf32>
    %cst_11 = arith.constant 0.000000e+00 : f32
    %15 = vector.broadcast %cst_11 : f32 to vector<2x64xf32>
    %16 = arith.maximumf %14, %15 : vector<2x64xf32>
    %17 = arith.truncf %16 : vector<2x64xf32> to vector<2x64xbf16>
    %c0_12 = arith.constant 0 : index
    %c0_13 = arith.constant 0 : index
    %18 = vector.load %arg6[%c0_12, %c0_13] : memref<64x8xbf16, #tpu.memory_space<vmem>>, vector<64x8xbf16>
    %cst_14 = arith.constant dense<0.000000e+00> : vector<2x8xf32>
    %19 = tpu.matmul %17, %18, %cst_14 {dimension_numbers = #tpu.dot_dimension_numbers<[1], [0], [0], [1], [0, 0, 1, 1], [], []>} : vector<2x64xbf16>, vector<64x8xbf16>, vector<2x8xf32> -> vector<2x8xf32>
    %c0_15 = arith.constant 0 : index
    %c0_16 = arith.constant 0 : index
    %20 = vector.load %arg7[%c0_15, %c0_16] : memref<1x8xf32, #tpu.memory_space<vmem>>, vector<1x8xf32>
    %21 = vector.broadcast %20 : vector<1x8xf32> to vector<2x8xf32>
    %22 = arith.addf %19, %21 : vector<2x8xf32>
    %cst_17 = arith.constant dense<0xFF800000> : vector<2xf32>
    %23 = vector.multi_reduction <maximumf>, %22, %cst_17 [1] : vector<2x8xf32> to vector<2xf32>
    %24 = vector.shape_cast %23 : vector<2xf32> to vector<2x1xf32>
    %25 = vector.broadcast %24 : vector<2x1xf32> to vector<2x8xf32>
    %26 = arith.subf %22, %25 : vector<2x8xf32>
    %27 = math.exp %26 : vector<2x8xf32>
    %cst_18 = arith.constant dense<0.000000e+00> : vector<2xf32>
    %28 = vector.multi_reduction <add>, %27, %cst_18 [1] : vector<2x8xf32> to vector<2xf32>
    %29 = vector.shape_cast %28 : vector<2xf32> to vector<2x1xf32>
    %30 = tpu.reciprocal %29 {approx = true} : vector<2x1xf32> -> vector<2x1xf32>
    %31 = vector.broadcast %30 : vector<2x1xf32> to vector<2x8xf32>
    %32 = arith.mulf %27, %31 : vector<2x8xf32>
    %c0_19 = arith.constant 0 : index
    %c0_20 = arith.constant 0 : index
    %33 = vector.load %arg8[%c0_19, %c0_20] : memref<2x8xf32, #tpu.memory_space<vmem>>, vector<2x8xf32>
    tpu.vector_store %arg8[%c0_19, %c0_20], %32 {strides = array<i32>} : memref<2x8xf32, #tpu.memory_space<vmem>>, vector<2x8xf32>,
    return
  }
  func.func @transform_0(%arg0: i32) -> (i32, i32) {
    %c0_i32 = arith.constant 0 : i32
    %c0_i32_0 = arith.constant 0 : i32
    return %arg0, %c0_i32 : i32, i32
  }
  func.func @transform_1(%arg0: i32) -> (i32, i32) {
    %c0_i32 = arith.constant 0 : i32
    %c0_i32_0 = arith.constant 0 : i32
    %c0_i32_1 = arith.constant 0 : i32
    return %c0_i32, %c0_i32_0 : i32, i32
  }
  func.func @transform_2(%arg0: i32) -> (i32, i32) {
    %c0_i32 = arith.constant 0 : i32
    %c0_i32_0 = arith.constant 0 : i32
    %c0_i32_1 = arith.constant 0 : i32
    return %c0_i32, %c0_i32_0 : i32, i32
  }
  func.func @transform_3(%arg0: i32) -> (i32, i32) {
    %c0_i32 = arith.constant 0 : i32
    %c0_i32_0 = arith.constant 0 : i32
    %c0_i32_1 = arith.constant 0 : i32
    return %c0_i32, %c0_i32_0 : i32, i32
  }
  func.func @transform_4(%arg0: i32) -> (i32, i32) {
    %c0_i32 = arith.constant 0 : i32
    %c0_i32_0 = arith.constant 0 : i32
    %c0_i32_1 = arith.constant 0 : i32
    return %c0_i32, %c0_i32_0 : i32, i32
  }
  func.func @transform_5(%arg0: i32) -> (i32, i32) {
    %c0_i32 = arith.constant 0 : i32
    %c0_i32_0 = arith.constant 0 : i32
    %c0_i32_1 = arith.constant 0 : i32
    return %c0_i32, %c0_i32_0 : i32, i32
  }
  func.func @transform_6(%arg0: i32) -> (i32, i32) {
    %c0_i32 = arith.constant 0 : i32
    %c0_i32_0 = arith.constant 0 : i32
    %c0_i32_1 = arith.constant 0 : i32
    return %c0_i32, %c0_i32_0 : i32, i32
  }
  func.func @transform_7(%arg0: i32) -> (i32, i32) {
    %c0_i32 = arith.constant 0 : i32
    %c0_i32_0 = arith.constant 0 : i32
    return %arg0, %c0_i32 : i32, i32
  }
}

</mosaic_0001>

<llo_original>
// kernel: tpu_custom_call.1
$region0: #{tpu_custom_call.1}
  #allocation0 [shape = 'u32[]', space=smem, size = 0x4, offset = 0x4, fixed_abs, tag = 'smem constant byte address 0x4 - core index']
  #allocation1 [shape = 'u32[72,128]{1,0:T(1,128)}', space=vmem, size = 0x9000, scoped, tag = 'internal scratch']
  %s0 = inlined_call_operand.vmem [shape: f32[2,16], index: 0, kind: input, shape index: {}]
  %s1 = inlined_call_operand.hbm [shape: bf16[16,64], index: 1, kind: input, shape index: {}]
  %s2 = inlined_call_operand.vmem [shape: f32[1,64], index: 2, kind: input, shape index: {}]
  %s3 = inlined_call_operand.vmem [shape: bf16[64,64], index: 3, kind: input, shape index: {}]
  %s4 = inlined_call_operand.vmem [shape: f32[1,64], index: 4, kind: input, shape index: {}]
  %s5 = inlined_call_operand.vmem [shape: bf16[64,8], index: 5, kind: input, shape index: {}]
  %s6 = inlined_call_operand.vmem [shape: f32[1,8], index: 6, kind: input, shape index: {}]
  %s7 = inlined_call_operand.hbm [shape: f32[2,8], index: 7, kind: output, shape index: {}]
  %s8 = sld [smem:[#allocation0]]
  $region42: #{tpu_custom_call.1} parent=0
    _
  %s10 = ssub.s32 1, %s8
  %s11 = scalar_select 0, %s10, %s8
  $region1: #{tpu_custom_call.1} parent=0
    #allocation2 [shape = 'u8[4096]{0}', space=vmem, size = 0x1000, scoped, tag = 'input window, operand 1, single buffered']
    #allocation3 [shape = 's32[1]{0}', space=sflag, size = 0x4, scoped, tag = 'scoped memory for tpu_custom_call.1']
    #allocation4 [shape = 's32[1]{0}', space=sflag, size = 0x4, scoped, tag = 'scoped memory for tpu_custom_call.1']
    #allocation5 [shape = 'u8[1024]{0}', space=vmem, size = 0x400, scoped, tag = 'output window, operand 0, single buffered']
    %12 = vsyncpa [#allocation3], 0
    %13 = vsyncpa [#allocation4], 0
    // Predicated region
    $region2: #{tpu_custom_call.1} parent=1 // pred_check
      _
    $region3: #{tpu_custom_call.1} parent=1 // pred_check_branch
      %15 = sbr.rel (0) target = $region5
    $region4: #{tpu_custom_call.1} parent=1 // pred_region
      _
    $region5: #{tpu_custom_call.1} parent=1 // pred_fallthru
      _
    // Predicated region
    $region6: #{tpu_custom_call.1} parent=1 // pred_check
      _
    $region7: #{tpu_custom_call.1} parent=1 // pred_check_branch
      %17 = sbr.rel (0) target = $region9
    $region8: #{tpu_custom_call.1} parent=1 // pred_region
      %19 = vsyncadd [#allocation3], 0
      %s20 = sshll.u32 %s1, 4
      %s21 = int_to_ptr.hbm [resolvable:$true] %s20
      %s22 = sshll.u32 [#allocation2], 4
      %s23 = int_to_ptr.vmem [resolvable:$true] %s22
      %28 = dma.hbm_to_vmem [thread:$0]  %s21, 128, %s23, [#allocation3], 64, 64, 4
    $region9: #{tpu_custom_call.1} parent=1 // pred_fallthru
      _
    // Predicated region
    $region10: #{tpu_custom_call.1} parent=1 // pred_check
      _
    $region11: #{tpu_custom_call.1} parent=1 // pred_check_branch
      %30 = sbr.rel (0) target = $region13
    $region12: #{tpu_custom_call.1} parent=1 // pred_region
      _
    $region13: #{tpu_custom_call.1} parent=1 // pred_fallthru
      _
    // Predicated region
    $region14: #{tpu_custom_call.1} parent=1 // pred_check
      _
    $region15: #{tpu_custom_call.1} parent=1 // pred_check_branch
      %32 = sbr.rel (0) target = $region17
    $region16: #{tpu_custom_call.1} parent=1 // pred_region
      _
    $region17: #{tpu_custom_call.1} parent=1 // pred_fallthru
      _
    // Predicated region
    $region18: #{tpu_custom_call.1} parent=1 // pred_check
      _
    $region19: #{tpu_custom_call.1} parent=1 // pred_check_branch
      %34 = sbr.rel (0) target = $region21
    $region20: #{tpu_custom_call.1} parent=1 // pred_region
      _
    $region21: #{tpu_custom_call.1} parent=1 // pred_fallthru
      _
    // Predicated region
    $region22: #{tpu_custom_call.1} parent=1 // pred_check
      _
    $region23: #{tpu_custom_call.1} parent=1 // pred_check_branch
      %36 = sbr.rel (0) target = $region25
    $region24: #{tpu_custom_call.1} parent=1 // pred_region
      _
    $region25: #{tpu_custom_call.1} parent=1 // pred_fallthru
      _
    // Predicated region
    $region26: #{tpu_custom_call.1} parent=1 // pred_check
      _
    $region27: #{tpu_custom_call.1} parent=1 // pred_check_branch
      %38 = sbr.rel (0) target = $region29
    $region28: #{tpu_custom_call.1} parent=1 // pred_region
      _
    $region29: #{tpu_custom_call.1} parent=1 // pred_fallthru
      _
    // Predicated region
    $region30: #{tpu_custom_call.1} parent=1 // pred_check
      _
    $region31: #{tpu_custom_call.1} parent=1 // pred_check_branch
      %40 = sbr.rel (0) target = $region33
    $region32: #{tpu_custom_call.1} parent=1 // pred_region
      %42 = dma.done [#allocation3], 128
    $region33: #{tpu_custom_call.1} parent=1 // pred_fallthru
      _
    %v44 = vld [vmem:[%s0] sm:$0x3]
    %v45 = vpack.c.bf16 %v44, %v44
    %v46 = vld [vmem:[#allocation2] sm:$0xf]
    %v47 = vld [vmem:[#allocation2 + $0x4] sm:$0xf]
    %v48 = vld [vmem:[%s2] sm:$0x1]
    %v50 = vperm.slane %v48, 0
    %v54 = vunpack.c.l.b16 %v46
    %v55 = vunpack.c.l.b16 %v47
    %v56 = vpack.c.b16 %v55, %v54
    %vm58 = vcmask 130048
    %v60 = vsel %vm58, %v45, 0
    %62 = vmatpush.bf16.msra.mxu0 0
    %63 = vmatpush.bf16.msra.mxu0 0
    %64 = vmatpush.bf16.msra.mxu0 0
    %65 = vmatpush.bf16.msra.mxu0 0
    %66 = vmatpush.bf16.msra.mxu0 0
    %67 = vmatpush.bf16.msra.mxu0 0
    %68 = vmatpush.bf16.msra.mxu0 0
    %69 = vmatpush.bf16.msra.mxu0 %v56
    %70 = vmatmul.bf16.gmra.mxu0 %v60
    %v71 = vpop.f32.mrf.mxu0
    %v72 = vadd.f32 %v50, %v71
    %v73 = vpop.f32.mrf.mxu0
    %74 = vdwg.mxu0
    %v75 = vmax.f32 %v72, 0.0
    %v76 = vpack.c.bf16 %v75, %v75
    %v77 = vld [vmem:[%s3] sm:$0xf]
    %v78 = vld [vmem:[%s3 + $0x4] sm:$0xf]
    %v79 = vld [vmem:[%s3 + $0x8] sm:$0xf]
    %v80 = vld [vmem:[%s3 + $0xc] sm:$0xf]
    %v81 = vld [vmem:[%s3 + $0x10] sm:$0xf]
    %v82 = vld [vmem:[%s3 + $0x14] sm:$0xf]
    %v83 = vld [vmem:[%s3 + $0x18] sm:$0xf]
    %v84 = vld [vmem:[%s3 + $0x1c] sm:$0xf]
    %v85 = vld [vmem:[%s4] sm:$0x1]
    %v87 = vperm.slane %v85, 0
    %v97 = vunpack.c.l.b16 %v77
    %v98 = vunpack.c.l.b16 %v78
    %v99 = vunpack.c.l.b16 %v79
    %v100 = vunpack.c.l.b16 %v80
    %v101 = vunpack.c.l.b16 %v81
    %v102 = vunpack.c.l.b16 %v82
    %v103 = vunpack.c.l.b16 %v83
    %v104 = vunpack.c.l.b16 %v84
    %v105 = vpack.c.b16 %v98, %v97
    %v106 = vpack.c.b16 %v100, %v99
    %v107 = vpack.c.b16 %v102, %v101
    %v108 = vpack.c.b16 %v104, %v103
    %vm113 = vcmask 523264
    %v115 = vsel %vm113, %v76, 0
    %117 = vmatpush.bf16.msra.mxu0 0
    %118 = vmatpush.bf16.msra.mxu0 0
    %119 = vmatpush.bf16.msra.mxu0 0
    %120 = vmatpush.bf16.msra.mxu0 0
    %121 = vmatpush.bf16.msra.mxu0 %v108
    %122 = vmatpush.bf16.msra.mxu0 %v107
    %123 = vmatpush.bf16.msra.mxu0 %v106
    %124 = vmatpush.bf16.msra.mxu0 %v105
    %125 = vmatmul.bf16.gmra.mxu0 %v115
    %v126 = vpop.f32.mrf.mxu0
    %v127 = vadd.f32 %v87, %v126
    %v128 = vpop.f32.mrf.mxu0
    %129 = vdwg.mxu0
    %v130 = vmax.f32 %v127, 0.0
    %v131 = vpack.c.bf16 %v130, %v130
    %v132 = vld [vmem:[%s5] sm:$0xf]
    %v133 = vld [vmem:[%s5 + $0x4] sm:$0xf]
    %v134 = vld [vmem:[%s5 + $0x8] sm:$0xf]
    %v135 = vld [vmem:[%s5 + $0xc] sm:$0xf]
    %v136 = vld [vmem:[%s5 + $0x10] sm:$0xf]
    %v137 = vld [vmem:[%s5 + $0x14] sm:$0xf]
    %v138 = vld [vmem:[%s5 + $0x18] sm:$0xf]
    %v139 = vld [vmem:[%s5 + $0x1c] sm:$0xf]
    %v140 = vld [vmem:[%s6] sm:$0x1]
    %v142 = vperm.slane %v140, 0
    %v152 = vunpack.c.l.b16 %v132
    %v153 = vunpack.c.l.b16 %v133
    %v154 = vunpack.c.l.b16 %v134
    %v155 = vunpack.c.l.b16 %v135
    %v156 = vunpack.c.l.b16 %v136
    %v157 = vunpack.c.l.b16 %v137
    %v158 = vunpack.c.l.b16 %v138
    %v159 = vunpack.c.l.b16 %v139
    %v160 = vpack.c.b16 %v153, %v152
    %v161 = vpack.c.b16 %v155, %v154
    %v162 = vpack.c.b16 %v157, %v156
    %v163 = vpack.c.b16 %v159, %v158
    %v169 = vsel %vm113, %v131, 0
    %171 = vmatpush.bf16.msra.mxu0 0
    %172 = vmatpush.bf16.msra.mxu0 0
    %173 = vmatpush.bf16.msra.mxu0 0
    %174 = vmatpush.bf16.msra.mxu0 0
    %175 = vmatpush.bf16.msra.mxu0 %v163
    %176 = vmatpush.bf16.msra.mxu0 %v162
    %177 = vmatpush.bf16.msra.mxu0 %v161
    %178 = vmatpush.bf16.msra.mxu0 %v160
    %179 = vmatmul.bf16.gmra.mxu0 %v169
    %v180 = vpop.f32.mrf.mxu0
    %v181 = vadd.f32 %v142, %v180
    %v182 = vpop.f32.mrf.mxu0
    %183 = vdwg.mxu0
    %vm184 = vcmask 58368
    %v185 = vsel %vm184, %v181, -inf
    %186 = vmax.xlane.f32.xlu0 %v185
    %v187 = vpop.xlane.xlu0 %186
    %v188 = vsub.f32 %v181, %v187
    %v189 = vmul.f32 %v188, 1.442695
    %v190 = vpow.pop %v189
    %v191 = vsel %vm184, %v190, 0.0
    %192 = vadd.xlane.f32.xlu0 %v191
    %v193 = vpop.xlane.xlu0 %192
    %v194 = vrcp.pop %v193
    %v195 = vmul.f32 %v190, %v194
    %196 = vst.msk [vmem:[#allocation5] sm:$0x3] %vm184, %v195
    // Predicated region
    $region34: #{tpu_custom_call.1} parent=1 // pred_check
      _
    $region35: #{tpu_custom_call.1} parent=1 // pred_check_branch
      %198 = sbr.rel (0) target = $region37
    $region36: #{tpu_custom_call.1} parent=1 // pred_region
      %200 = vsyncadd [#allocation4], 0
      %s202 = sshll.u32 [#allocation5], 4
      %s203 = int_to_ptr.vmem [resolvable:$true] %s202
      %s204 = sshll.u32 %s7, 4
      %s205 = int_to_ptr.hbm [resolvable:$true] %s204
      %207 = dma.vmem_to_hbm [thread:$0]  %s203, 32, %s205, [#allocation4]
    $region37: #{tpu_custom_call.1} parent=1 // pred_fallthru
      _
    // Predicated region
    $region38: #{tpu_custom_call.1} parent=1 // pred_check
      _
    $region39: #{tpu_custom_call.1} parent=1 // pred_check_branch
      %209 = sbr.rel (0) target = $region41
    $region40: #{tpu_custom_call.1} parent=1 // pred_region
      %211 = dma.done [#allocation4], 32
    $region41: #{tpu_custom_call.1} parent=1 // pred_fallthru
      _
    %212 = vsyncpa [#allocation3], 1
    %213 = vsyncpa [#allocation4], 1

</llo_original>
